<compile_context>
chip_gen: v7x
topology: tpu7x:2x2x1
jax: 0.10.0
libtpu: 0.0.40
codegen_flags: <defaults>
</compile_context>

<pallas_src>
import jax
import jax.numpy as jnp
from jax import lax
from jax.experimental import pallas as pl
from jax.experimental.pallas import tpu as pltpu

EPS = 1e-5


def _vmem_limit_bytes():
    # Never request all of VMEM (v7x only has 64 MiB per TensorCore): take ~75%.
    try:
        return int(pltpu.get_tpu_info().vmem_capacity_bytes * 3 // 4)
    except Exception:
        return 48 * 1024 * 1024


def _pick_batch_tile(n, l_out, c_in, c_out, vmem_budget):
    # Rough per-row VMEM footprint (channels are lane-padded to 128 on chip and
    # activation blocks are double-buffered by the pipeline).  Any divisor of n
    # is legal; pick the largest one that stays well inside the scoped budget.
    cin_p = max(c_in, 128)
    cout_p = max(c_out, 128)
    bytes_per_row = 4 * (4 * cin_p + 8 * cout_p)
    max_rows = max(8, int(vmem_budget * 0.4) // bytes_per_row)
    best = 1
    for d in range(1, n + 1):
        if n % d == 0 and d * l_out <= max_rows:
            best = d
    return best


# ----------------------------- pass 1 -----------------------------------------
# conv1 (k=3, stride s) [+ 1x1 downsample conv], plus per-tile BN partial stats.
def _make_pass1(bt, l_out, c_in, c_out, has_ds, strided, mxu_dtype):
    rows = bt * l_out

    def kernel(*refs):
        if has_ds:
            x_ref, w1_ref, wd_ref, h1_ref, s1_ref, id_ref, sd_ref = refs
        else:
            x_ref, w1_ref, h1_ref, s1_ref = refs

        if strided:
            # x_ref holds the three pre-strided taps: (3, bt, l_out, c_in).
            taps = [x_ref[k].reshape(rows, c_in) for k in range(3)]
        else:
            # x_ref is the single length-padded input (bt, l_out + 2, c_in);
            # the three k=3 taps are shifted slices of it (no HBM duplication).
            taps = [x_ref[:, k:k + l_out, :].reshape(rows, c_in) for k in range(3)]

        # conv1 as three accumulated MXU matmuls (bias cancels in train-mode BN).
        h = jnp.dot(taps[0].astype(mxu_dtype), w1_ref[0].astype(mxu_dtype),
                    preferred_element_type=jnp.float32)
        h += jnp.dot(taps[1].astype(mxu_dtype), w1_ref[1].astype(mxu_dtype),
                     preferred_element_type=jnp.float32)
        h += jnp.dot(taps[2].astype(mxu_dtype), w1_ref[2].astype(mxu_dtype),
                     preferred_element_type=jnp.float32)
        h1_ref[...] = h.reshape(bt, l_out, c_out)
        s1_ref[...] = jnp.concatenate(
            [jnp.sum(h, axis=0, keepdims=True),
             jnp.sum(h * h, axis=0, keepdims=True)], axis=0).reshape(1, 2, c_out)

        if has_ds:
            # 1x1 downsample conv reads the (strided) center tap.
            ident = jnp.dot(taps[1].astype(mxu_dtype), wd_ref[...].astype(mxu_dtype),
                            preferred_element_type=jnp.float32)
            id_ref[...] = ident.reshape(bt, l_out, c_out)
            sd_ref[...] = jnp.concatenate(
                [jnp.sum(ident, axis=0, keepdims=True),
                 jnp.sum(ident * ident, axis=0, keepdims=True)],
                axis=0).reshape(1, 2, c_out)

    return kernel


# ----------------------------- pass 2 -----------------------------------------
# BN1 (scale/shift) + ReLU + conv2 (k=3, stride 1), plus BN2 partial stats.
def _make_pass2(bt, l_out, c_out, mxu_dtype):
    rows = bt * l_out

    def kernel(h1_ref, sc_ref, sh_ref, w2_ref, h2_ref, s2_ref):
        h1 = h1_ref[...].reshape(rows, c_out)
        a = jnp.maximum(h1 * sc_ref[...] + sh_ref[...], 0.0)           # BN1 + ReLU

        # +-1 taps via XLU rolls + per-sample boundary masks: no zero-padded
        # scratch buffer, no im2col concatenate (saves the vst-slot copy passes).
        pos = lax.broadcasted_iota(jnp.int32, (rows, c_out), 0) % l_out
        a_prev = jnp.where(pos != 0, pltpu.roll(a, shift=1, axis=0), 0.0)
        a_next = jnp.where(pos != l_out - 1,
                           pltpu.roll(a, shift=rows - 1, axis=0), 0.0)

        h2 = jnp.dot(a_prev.astype(mxu_dtype), w2_ref[0].astype(mxu_dtype),
                     preferred_element_type=jnp.float32)
        h2 += jnp.dot(a.astype(mxu_dtype), w2_ref[1].astype(mxu_dtype),
                      preferred_element_type=jnp.float32)
        h2 += jnp.dot(a_next.astype(mxu_dtype), w2_ref[2].astype(mxu_dtype),
                      preferred_element_type=jnp.float32)

        h2_ref[...] = h2.reshape(bt, l_out, c_out)
        s2_ref[...] = jnp.concatenate(
            [jnp.sum(h2, axis=0, keepdims=True),
             jnp.sum(h2 * h2, axis=0, keepdims=True)], axis=0).reshape(1, 2, c_out)

    return kernel


# ----------------------------- pass 3 -----------------------------------------
# BN2 scale/shift + (normalized downsample | identity) + residual add + ReLU.
def _make_pass3(bt, l_out, c_in, c_out, has_ds):
    rows = bt * l_out

    def kernel(*refs):
        if has_ds:
            h2_ref, sc2_ref, sh2_ref, id_ref, scd_ref, shd_ref, o_ref = refs
            ident = id_ref[...].reshape(rows, c_out) * scd_ref[...] + shd_ref[...]
        else:
            h2_ref, sc2_ref, sh2_ref, x_ref, o_ref = refs
            ident = x_ref[:, 1:l_out + 1, :].reshape(rows, c_in)    # c_in == c_out here
        h2 = h2_ref[...].reshape(rows, c_out) * sc2_ref[...] + sh2_ref[...]
        o_ref[...] = jnp.maximum(h2 + ident, 0.0).reshape(bt, l_out, c_out)

    return kernel


# ----------------------------- wrapper -----------------------------------------
def residual_block_forward(x_ncl, params, stride=1, batch_tile=None,
                           mxu_dtype=jnp.float32):
    """Training-mode ResidualBlock forward: (N, C_in, L) -> (N, C_out, L_out)."""
    n, c_in, l = x_ncl.shape
    c_out = params["conv1_w"].shape[0]
    l_out = (l + 2 - 3) // stride + 1
    has_ds = (stride != 1) or (c_in != c_out)
    strided = stride != 1
    rows_total = n * l_out

    vmem_limit = _vmem_limit_bytes()
    if batch_tile is None or n % batch_tile != 0:
        batch_tile = _pick_batch_tile(n, l_out, c_in, c_out, vmem_limit)
    bt = batch_tile
    n_tiles = n // bt

    cparams = pltpu.CompilerParams(
        dimension_semantics=("parallel",),
        vmem_limit_bytes=vmem_limit,
    )

    f32 = jnp.float32
    # NCL -> NLC, compact channels (no 128-lane zero padding in HBM), length pad 1/side.
    x = jnp.transpose(x_ncl, (0, 2, 1)).astype(f32)            # (N, L, C_in)
    x_pad = jnp.pad(x, ((0, 0), (1, 1), (0, 0)))               # (N, L+2, C_in)

    # Conv weights: (C_out, C_in, K) -> (K, C_in, C_out); biases dropped (cancel in BN).
    w1 = jnp.transpose(params["conv1_w"].astype(f32), (2, 1, 0))
    w2 = jnp.transpose(params["conv2_w"].astype(f32), (2, 1, 0))

    if strided:
        span = stride * (l_out - 1) + 1
        x_in = jnp.stack([x_pad[:, k:k + span:stride, :] for k in range(3)], axis=0)
        x_in_spec = pl.BlockSpec((3, bt, l_out, c_in), lambda i: (0, i, 0, 0))
    else:
        x_in = x_pad
        x_in_spec = pl.BlockSpec((bt, l + 2, c_in), lambda i: (i, 0, 0))

    def full_spec(shape):
        nd = len(shape)
        return pl.BlockSpec(shape, lambda i: (0,) * nd)

    act_spec = pl.BlockSpec((bt, l_out, c_out), lambda i: (i, 0, 0))
    stat_spec = pl.BlockSpec((1, 2, c_out), lambda i: (i, 0, 0))
    act_shape = jax.ShapeDtypeStruct((n, l_out, c_out), f32)
    stat_shape = jax.ShapeDtypeStruct((n_tiles, 2, c_out), f32)

    # ---- pass 1: conv1 (+ downsample conv) + partial stats ----
    p1_in = [x_in, w1]
    p1_in_specs = [x_in_spec, full_spec((3, c_in, c_out))]
    p1_out_shapes = [act_shape, stat_shape]
    p1_out_specs = [act_spec, stat_spec]
    if has_ds:
        wd = jnp.transpose(params["convd_w"][:, :, 0].astype(f32), (1, 0))  # (C_in, C_out)
        p1_in.append(wd)
        p1_in_specs.append(full_spec((c_in, c_out)))
        p1_out_shapes += [act_shape, stat_shape]
        p1_out_specs += [act_spec, stat_spec]

    p1_res = pl.pallas_call(
        _make_pass1(bt, l_out, c_in, c_out, has_ds, strided, mxu_dtype),
        grid=(n_tiles,),
        in_specs=p1_in_specs,
        out_specs=p1_out_specs,
        out_shape=p1_out_shapes,
        compiler_params=cparams,
    )(*p1_in)
    if has_ds:
        h1, s1, ident_raw, sd = p1_res
    else:
        h1, s1 = p1_res

    # Finish the tiny per-channel BN statistics in plain JAX between passes.
    def scale_shift(partial, gamma, beta):
        s = jnp.sum(partial, axis=0)                     # (2, C_out)
        mean = s[0] / rows_total
        var = jnp.maximum(s[1] / rows_total - mean * mean, 0.0)
        scale = gamma.astype(f32) * lax.rsqrt(var + EPS)
        shift = beta.astype(f32) - mean * scale
        return scale.reshape(1, c_out), shift.reshape(1, c_out)

    sc1, sh1 = scale_shift(s1, params["bn1_g"], params["bn1_b"])

    # ---- pass 2: BN1 + ReLU + conv2 + partial stats ----
    h2, s2 = pl.pallas_call(
        _make_pass2(bt, l_out, c_out, mxu_dtype),
        grid=(n_tiles,),
        in_specs=[act_spec, full_spec((1, c_out)), full_spec((1, c_out)),
                  full_spec((3, c_out, c_out))],
        out_specs=[act_spec, stat_spec],
        out_shape=[act_shape, stat_shape],
        compiler_params=cparams,
    )(h1, sc1, sh1, w2)

    sc2, sh2 = scale_shift(s2, params["bn2_g"], params["bn2_b"])

    # ---- pass 3: BN2 + residual + ReLU ----
    p3_in = [h2, sc2, sh2]
    p3_specs = [act_spec, full_spec((1, c_out)), full_spec((1, c_out))]
    if has_ds:
        scd, shd = scale_shift(sd, params["bnd_g"], params["bnd_b"])
        p3_in += [ident_raw, scd, shd]
        p3_specs += [act_spec, full_spec((1, c_out)), full_spec((1, c_out))]
    else:
        p3_in.append(x_pad)
        p3_specs.append(pl.BlockSpec((bt, l + 2, c_in), lambda i: (i, 0, 0)))

    out_nlc = pl.pallas_call(
        _make_pass3(bt, l_out, c_in, c_out, has_ds),
        grid=(n_tiles,),
        in_specs=p3_specs,
        out_specs=act_spec,
        out_shape=act_shape,
        compiler_params=cparams,
    )(*p3_in)

    return jnp.transpose(out_nlc, (0, 2, 1))     # back to PyTorch NCL layout


# ----------------------------- test harness ------------------------------------
def init_params(key, c_in, c_out, stride):
    keys = jax.random.split(key, 12)
    p = {
        "conv1_w": 0.3 * jax.random.normal(keys[0], (c_out, c_in, 3), jnp.float32),
        "conv1_b": 0.1 * jax.random.normal(keys[1], (c_out,), jnp.float32),
        "bn1_g": 1.0 + 0.1 * jax.random.normal(keys[2], (c_out,), jnp.float32),
        "bn1_b": 0.1 * jax.random.normal(keys[3], (c_out,), jnp.float32),
        "conv2_w": 0.3 * jax.random.normal(keys[4], (c_out, c_out, 3), jnp.float32),
        "conv2_b": 0.1 * jax.random.normal(keys[5], (c_out,), jnp.float32),
        "bn2_g": 1.0 + 0.1 * jax.random.normal(keys[6], (c_out,), jnp.float32),
        "bn2_b": 0.1 * jax.random.normal(keys[7], (c_out,), jnp.float32),
    }
    if stride != 1 or c_in != c_out:
        p.update({
            "convd_w": 0.3 * jax.random.normal(keys[8], (c_out, c_in, 1), jnp.float32),
            "convd_b": 0.1 * jax.random.normal(keys[9], (c_out,), jnp.float32),
            "bnd_g": 1.0 + 0.1 * jax.random.normal(keys[10], (c_out,), jnp.float32),
            "bnd_b": 0.1 * jax.random.normal(keys[11], (c_out,), jnp.float32),
        })
    return p


def reference_forward(x_ncl, params, stride=1):
    # Pure-JAX reference (mirrors the torch forward in train mode, incl. biases).
    def conv1d(x, w, b, s, pad):
        y = lax.conv_general_dilated(x, w, (s,), [(pad, pad)],
                                     dimension_numbers=("NCH", "OIH", "NCH"))
        return y + b[None, :, None]

    def bn(x, g, be):
        mean = jnp.mean(x, axis=(0, 2), keepdims=True)
        var = jnp.mean((x - mean) ** 2, axis=(0, 2), keepdims=True)
        return (x - mean) * lax.rsqrt(var + EPS) * g[None, :, None] + be[None, :, None]

    out = conv1d(x_ncl, params["conv1_w"], params["conv1_b"], stride, 1)
    out = jax.nn.relu(bn(out, params["bn1_g"], params["bn1_b"]))
    out = conv1d(out, params["conv2_w"], params["conv2_b"], 1, 1)
    out = bn(out, params["bn2_g"], params["bn2_b"])
    if "convd_w" in params:
        ident = conv1d(x_ncl, params["convd_w"], params["convd_b"], stride, 0)
        ident = bn(ident, params["bnd_g"], params["bnd_b"])
    else:
        ident = x_ncl
    return jax.nn.relu(out + ident)


if __name__ == "__main__":
    key = jax.random.PRNGKey(0)
    configs = [
        # (N, C_in, L, C_out, stride, batch_tile)
        (2, 8, 16, 8, 1, 1),     # identity path; batch_tile=1 -> grid=2, exercises stat merge
        (2, 4, 16, 8, 1, None),  # downsample (channel change), stride 1, auto tile
        (2, 4, 16, 8, 2, 1),     # strided downsample, pre-strided taps
    ]
    for idx, (N, C_IN, L, C_OUT, STRIDE, BT) in enumerate(configs):
        kx, kp, key = jax.random.split(key, 3)
        x = jax.random.normal(kx, (N, C_IN, L), jnp.float32)
        params = init_params(kp, C_IN, C_OUT, STRIDE)

        out = jax.block_until_ready(
            residual_block_forward(x, params, stride=STRIDE, batch_tile=BT))
        ref = reference_forward(x, params, stride=STRIDE)
        assert out.shape == ref.shape, (idx, out.shape, ref.shape)
        max_err = float(jnp.max(jnp.abs(out - ref)))
        assert jnp.allclose(out, ref, atol=1e-4, rtol=1e-4), (idx, max_err)
    print("KERNEL_OK")
</pallas_src>

<mosaic_0001>
module attributes {stable_mosaic.version = 11 : i64} {
  func.func @kernel(%arg0: i32, %arg1: memref<1x18x8xf32, #tpu.memory_space<vmem>>, %arg2: memref<3x8x8xf32, #tpu.memory_space<vmem>>, %arg3: memref<1x16x8xf32, #tpu.memory_space<vmem>>, %arg4: memref<1x2x8xf32, #tpu.memory_space<vmem>>) attributes {dimension_semantics = [#tpu.dimension_semantics<parallel>], iteration_bounds = array<i64: 2>, scalar_prefetch = 0 : i64, scratch_operands = 0 : i64, tpu.core_type = #tpu.core_type<tc>, window_params = [{transform_indices = @transform_0, window_bounds = array<i64: 1, 18, 8>}, {pipeline_mode = #tpu.pipeline_mode<synchronous>, transform_indices = @transform_1, window_bounds = array<i64: 3, 8, 8>}, {transform_indices = @transform_2, window_bounds = array<i64: 1, 16, 8>}, {transform_indices = @transform_3, window_bounds = array<i64: 1, 2, 8>}]} {
    %c0 = arith.constant 0 : index
    %c0_0 = arith.constant 0 : index
    %c0_1 = arith.constant 0 : index
    %0 = vector.load %arg1[%c0, %c0_0, %c0_1] : memref<1x18x8xf32, #tpu.memory_space<vmem>>, vector<1x16x8xf32>
    %1 = vector.shape_cast %0 : vector<1x16x8xf32> to vector<16x8xf32>
    %c0_2 = arith.constant 0 : index
    %c1 = arith.constant 1 : index
    %c0_3 = arith.constant 0 : index
    %2 = vector.load %arg1[%c0_2, %c1, %c0_3] : memref<1x18x8xf32, #tpu.memory_space<vmem>>, vector<1x16x8xf32>
    %3 = vector.shape_cast %2 : vector<1x16x8xf32> to vector<16x8xf32>
    %c0_4 = arith.constant 0 : index
    %c2 = arith.constant 2 : index
    %c0_5 = arith.constant 0 : index
    %4 = vector.load %arg1[%c0_4, %c2, %c0_5] : memref<1x18x8xf32, #tpu.memory_space<vmem>>, vector<1x16x8xf32>
    %5 = vector.shape_cast %4 : vector<1x16x8xf32> to vector<16x8xf32>
    %c0_6 = arith.constant 0 : index
    %c0_7 = arith.constant 0 : index
    %c0_8 = arith.constant 0 : index
    %6 = vector.load %arg2[%c0_6, %c0_7, %c0_8] : memref<3x8x8xf32, #tpu.memory_space<vmem>>, vector<1x8x8xf32>
    %7 = vector.shape_cast %6 : vector<1x8x8xf32> to vector<8x8xf32>
    %cst = arith.constant dense<0.000000e+00> : vector<16x8xf32>
    %8 = tpu.matmul %1, %7, %cst {dimension_numbers = #tpu.dot_dimension_numbers<[1], [0], [0], [1], [0, 0, 1, 1], [], []>} : vector<16x8xf32>, vector<8x8xf32>, vector<16x8xf32> -> vector<16x8xf32>
    %c1_9 = arith.constant 1 : index
    %c0_10 = arith.constant 0 : index
    %c0_11 = arith.constant 0 : index
    %9 = vector.load %arg2[%c1_9, %c0_10, %c0_11] : memref<3x8x8xf32, #tpu.memory_space<vmem>>, vector<1x8x8xf32>
    %10 = vector.shape_cast %9 : vector<1x8x8xf32> to vector<8x8xf32>
    %cst_12 = arith.constant dense<0.000000e+00> : vector<16x8xf32>
    %11 = tpu.matmul %3, %10, %cst_12 {dimension_numbers = #tpu.dot_dimension_numbers<[1], [0], [0], [1], [0, 0, 1, 1], [], []>} : vector<16x8xf32>, vector<8x8xf32>, vector<16x8xf32> -> vector<16x8xf32>
    %12 = arith.addf %8, %11 : vector<16x8xf32>
    %c2_13 = arith.constant 2 : index
    %c0_14 = arith.constant 0 : index
    %c0_15 = arith.constant 0 : index
    %13 = vector.load %arg2[%c2_13, %c0_14, %c0_15] : memref<3x8x8xf32, #tpu.memory_space<vmem>>, vector<1x8x8xf32>
    %14 = vector.shape_cast %13 : vector<1x8x8xf32> to vector<8x8xf32>
    %cst_16 = arith.constant dense<0.000000e+00> : vector<16x8xf32>
    %15 = tpu.matmul %5, %14, %cst_16 {dimension_numbers = #tpu.dot_dimension_numbers<[1], [0], [0], [1], [0, 0, 1, 1], [], []>} : vector<16x8xf32>, vector<8x8xf32>, vector<16x8xf32> -> vector<16x8xf32>
    %16 = arith.addf %12, %15 : vector<16x8xf32>
    %17 = vector.shape_cast %16 : vector<16x8xf32> to vector<1x16x8xf32>
    %c0_17 = arith.constant 0 : index
    %c0_18 = arith.constant 0 : index
    %c0_19 = arith.constant 0 : index
    %18 = vector.load %arg3[%c0_17, %c0_18, %c0_19] : memref<1x16x8xf32, #tpu.memory_space<vmem>>, vector<1x16x8xf32>
    tpu.vector_store %arg3[%c0_17, %c0_18, %c0_19], %17 {strides = array<i32>} : memref<1x16x8xf32, #tpu.memory_space<vmem>>, vector<1x16x8xf32>,
    %cst_20 = arith.constant dense<0.000000e+00> : vector<8xf32>
    %19 = vector.multi_reduction <add>, %16, %cst_20 [0] : vector<16x8xf32> to vector<8xf32>
    %20 = vector.shape_cast %19 : vector<8xf32> to vector<1x8xf32>
    %21 = arith.mulf %16, %16 : vector<16x8xf32>
    %cst_21 = arith.constant dense<0.000000e+00> : vector<8xf32>
    %22 = vector.multi_reduction <add>, %21, %cst_21 [0] : vector<16x8xf32> to vector<8xf32>
    %23 = vector.shape_cast %22 : vector<8xf32> to vector<1x8xf32>
    %24 = tpu.concatenate %20, %23 in 0 : vector<1x8xf32>, vector<1x8xf32> -> vector<2x8xf32>
    %25 = vector.shape_cast %24 : vector<2x8xf32> to vector<1x2x8xf32>
    %c0_22 = arith.constant 0 : index
    %c0_23 = arith.constant 0 : index
    %c0_24 = arith.constant 0 : index
    %26 = vector.load %arg4[%c0_22, %c0_23, %c0_24] : memref<1x2x8xf32, #tpu.memory_space<vmem>>, vector<1x2x8xf32>
    tpu.vector_store %arg4[%c0_22, %c0_23, %c0_24], %25 {strides = array<i32>} : memref<1x2x8xf32, #tpu.memory_space<vmem>>, vector<1x2x8xf32>,
    return
  }
  func.func @transform_0(%arg0: i32) -> (i32, i32, i32) {
    %c0_i32 = arith.constant 0 : i32
    %c0_i32_0 = arith.constant 0 : i32
    %c0_i32_1 = arith.constant 0 : i32
    return %arg0, %c0_i32, %c0_i32_0 : i32, i32, i32
  }
  func.func @transform_1(%arg0: i32) -> (i32, i32, i32) {
    %c0_i32 = arith.constant 0 : i32
    %c0_i32_0 = arith.constant 0 : i32
    %c0_i32_1 = arith.constant 0 : i32
    %c0_i32_2 = arith.constant 0 : i32
    return %c0_i32, %c0_i32_0, %c0_i32_1 : i32, i32, i32
  }
  func.func @transform_2(%arg0: i32) -> (i32, i32, i32) {
    %c0_i32 = arith.constant 0 : i32
    %c0_i32_0 = arith.constant 0 : i32
    %c0_i32_1 = arith.constant 0 : i32
    return %arg0, %c0_i32, %c0_i32_0 : i32, i32, i32
  }
  func.func @transform_3(%arg0: i32) -> (i32, i32, i32) {
    %c0_i32 = arith.constant 0 : i32
    %c0_i32_0 = arith.constant 0 : i32
    %c0_i32_1 = arith.constant 0 : i32
    return %arg0, %c0_i32, %c0_i32_0 : i32, i32, i32
  }
}

</mosaic_0001>

<llo_original>
// kernel: tpu_custom_call.1
$region0: #{tpu_custom_call.1}
  #allocation0 [shape = 'u32[]', space=smem, size = 0x4, offset = 0x4, fixed_abs, tag = 'smem constant byte address 0x4 - core index']
  #allocation1 [shape = 'u32[144,128]{1,0:T(1,128)}', space=vmem, size = 0x12000, scoped, tag = 'internal scratch']
  %s0 = inlined_call_operand.vmem [shape: f32[2,18,8], index: 0, kind: input, shape index: {}]
  %s1 = inlined_call_operand.vmem [shape: f32[3,8,8], index: 1, kind: input, shape index: {}]
  %s2 = inlined_call_operand.vmem [shape: f32[2,16,8], index: 2, kind: output, shape index: {0}]
  %s3 = inlined_call_operand.hbm [shape: f32[2,2,8], index: 3, kind: output, shape index: {1}]
  %4 = xla_tuple %s2, %s3
  %s5 = sld [smem:[#allocation0]]
  $region49: #{tpu_custom_call.1} parent=0
    _
  %s7 = ssub.s32 1, %s5
  %s8 = scalar_select 0, %s7, %s5
  $region1: #{tpu_custom_call.1} parent=0
    #allocation2 [shape = 'u8[2048]{0}', space=vmem, size = 0x800, scoped, tag = 'output window, operand 1']
    #allocation3 [shape = 's32[2]{0}', space=sflag, size = 0x8, scoped, tag = 'scoped memory for tpu_custom_call.1']
    %9 = vsyncpa [#allocation3], 0
    %s10 = scalar_lea.sflag [#allocation3], 1
    %11 = vsyncpa %s10, 0
    loop: start=0, step=1, limit=4
    $region2: #{tpu_custom_call.1} parent=1 // loop_pre_header
      _
    $region3: #{tpu_custom_call.1} parent=1 // loop_header
      %s13 = sphi 0, %s17
      %p14 = scmp.ge.s32.totalorder %s13, 4
      %s23 = sphi 0, %s25
      %s26 = sphi 0, %s23
      %s27 = sphi 0, %s26
      %s43 = sphi 0, %s27
      %s47 = sphi 0, %s47
      %s49 = sphi 0, %s47
      %s50 = sphi 0, %s49
      %s64 = sphi 0, %s50
      %s70 = sphi 0, %s72
      %s73 = sphi 0, %s70
      %s74 = sphi 0, %s73
      %s90 = sphi 0, %s74
      %s96 = sphi 0, %s98
      %s99 = sphi 0, %s96
      %s100 = sphi 0, %s99
      %s116 = sphi 0, %s100
    $region4: #{tpu_custom_call.1} parent=1 // loop_header_branch
      %16 = sbr.rel (%p14) target = $region8
    $region5: #{tpu_custom_call.1} parent=1 // loop_body
      %s18 = ssub.s32 %s13, 1
      %s19 = ssub.s32 %s13, 2
      %s20 = sadd.s32 %s13, 1
      %s21 = ssub.s32 %s13, %s20
      %p22 = scmp.eq.s32.totalorder %s21, 0
      %s24 = sadd.s32 %s23, 1
      %s25 = scalar_select %p22, %s23, %s24
      %p28 = pneg %p22
      %p29 = scmp.eq.s32.totalorder %s13, 1
      %p30 = por %p28, %p29
      %p31 = scmp.ne.s32.totalorder %s23, %s26
      %p32 = scmp.eq.s32.totalorder %s13, 0
      %p33 = por %p31, %p32
      %p34 = scmp.ne.s32.totalorder %s23, %s26
      %p35 = scmp.eq.s32.totalorder %s18, 1
      %p36 = por %p34, %p35
      %p37 = scmp.ne.s32.totalorder %s26, %s27
      %p38 = scmp.eq.s32.totalorder %s18, 0
      %p39 = por %p37, %p38
      %p40 = scmp.ne.s32.totalorder %s26, %s27
      %p41 = scmp.eq.s32.totalorder %s19, 1
      %p42 = por %p40, %p41
      %p44 = scmp.ne.s32.totalorder %s27, %s43
      %p45 = scmp.eq.s32.totalorder %s19, 0
      %p46 = por %p44, %p45
      %s48 = sadd.s32 %s47, 1
      %p51 = scmp.eq.s32.totalorder %s13, 1
      %p52 = scmp.ne.s32.totalorder %s47, %s49
      %p53 = scmp.eq.s32.totalorder %s13, 0
      %p54 = por %p52, %p53
      %p55 = scmp.ne.s32.totalorder %s47, %s49
      %p56 = scmp.eq.s32.totalorder %s18, 1
      %p57 = por %p55, %p56
      %p58 = scmp.ne.s32.totalorder %s49, %s50
      %p59 = scmp.eq.s32.totalorder %s18, 0
      %p60 = por %p58, %p59
      %p61 = scmp.ne.s32.totalorder %s49, %s50
      %p62 = scmp.eq.s32.totalorder %s19, 1
      %p63 = por %p61, %p62
      %p65 = scmp.ne.s32.totalorder %s50, %s64
      %p66 = scmp.eq.s32.totalorder %s19, 0
      %p67 = por %p65, %p66
      %s68 = ssub.s32 %s13, %s20
      %p69 = scmp.eq.s32.totalorder %s68, 0
      %s71 = sadd.s32 %s70, 1
      %s72 = scalar_select %p69, %s70, %s71
      %p75 = pneg %p69
      %p76 = scmp.eq.s32.totalorder %s13, 1
      %p77 = por %p75, %p76
      %p78 = scmp.ne.s32.totalorder %s70, %s73
      %p79 = scmp.eq.s32.totalorder %s13, 0
      %p80 = por %p78, %p79
      %p81 = scmp.ne.s32.totalorder %s70, %s73
      %p82 = scmp.eq.s32.totalorder %s18, 1
      %p83 = por %p81, %p82
      %p84 = scmp.ne.s32.totalorder %s73, %s74
      %p85 = scmp.eq.s32.totalorder %s18, 0
      %p86 = por %p84, %p85
      %p87 = scmp.ne.s32.totalorder %s73, %s74
      %p88 = scmp.eq.s32.totalorder %s19, 1
      %p89 = por %p87, %p88
      %p91 = scmp.ne.s32.totalorder %s74, %s90
      %p92 = scmp.eq.s32.totalorder %s19, 0
      %p93 = por %p91, %p92
      %s94 = ssub.s32 %s13, %s20
      %p95 = scmp.eq.s32.totalorder %s94, 0
      %s97 = sadd.s32 %s96, 1
      %s98 = scalar_select %p95, %s96, %s97
      %p101 = pneg %p95
      %p102 = scmp.eq.s32.totalorder %s13, 1
      %p103 = por %p101, %p102
      %p104 = scmp.ne.s32.totalorder %s96, %s99
      %p105 = scmp.eq.s32.totalorder %s13, 0
      %p106 = por %p104, %p105
      %p107 = scmp.ne.s32.totalorder %s96, %s99
      %p108 = scmp.eq.s32.totalorder %s18, 1
      %p109 = por %p107, %p108
      %p110 = scmp.ne.s32.totalorder %s99, %s100
      %p111 = scmp.eq.s32.totalorder %s18, 0
      %p112 = por %p110, %p111
      %p113 = scmp.ne.s32.totalorder %s99, %s100
      %p114 = scmp.eq.s32.totalorder %s19, 1
      %p115 = por %p113, %p114
      %p117 = scmp.ne.s32.totalorder %s100, %s116
      %p118 = scmp.eq.s32.totalorder %s19, 0
      %p119 = por %p117, %p118
      %p120 = scmp.le.s32.totalorder 1, %s13
      %p121 = scmp.lt.s32.totalorder %s13, 3
      %p122 = pnand %p120, %p121
      %p123 = pneg %p122
      // Predicated region
      $region9: #{tpu_custom_call.1} parent=5 // pred_check
        _
      $region10: #{tpu_custom_call.1} parent=5 // pred_check_branch
        %125 = sbr.rel (%p122) target = $region12
      $region11: #{tpu_custom_call.1} parent=5 // pred_region
        %s126 = ssub.s32 %s13, 1
        // Predicated region
        $region13: #{tpu_custom_call.1} parent=11 // pred_check
          %p127 = pneg %p60
        $region14: #{tpu_custom_call.1} parent=11 // pred_check_branch
          %129 = sbr.rel (%p127) target = $region16
        $region15: #{tpu_custom_call.1} parent=11 // pred_region
          _
        $region16: #{tpu_custom_call.1} parent=11 // pred_fallthru
          _
      $region12: #{tpu_custom_call.1} parent=5 // pred_fallthru
        _
      %p130 = scmp.lt.s32.totalorder %s13, 2
      // Predicated region
      $region17: #{tpu_custom_call.1} parent=5 // pred_check
        %p131 = pneg %p130
      $region18: #{tpu_custom_call.1} parent=5 // pred_check_branch
        %133 = sbr.rel (%p131) target = $region20
      $region19: #{tpu_custom_call.1} parent=5 // pred_region
        // Predicated region
        $region21: #{tpu_custom_call.1} parent=19 // pred_check
          %p134 = pneg %p33
        $region22: #{tpu_custom_call.1} parent=19 // pred_check_branch
          %136 = sbr.rel (%p134) target = $region24
        $region23: #{tpu_custom_call.1} parent=19 // pred_region
          %p137 = scmp.lt.s32.totalorder %s13, 1
          %s138 = scalar_select %p137, %s13, 1
          %s139 = smul.addr %s138, 3
          %s140 = smul.addr %s139, 8
          %s141 = scalar_lea.vmem %s0, %s140
        $region24: #{tpu_custom_call.1} parent=19 // pred_fallthru
          _
      $region20: #{tpu_custom_call.1} parent=5 // pred_fallthru
        _
      %p142 = scmp.le.s32.totalorder 1, %s13
      %p143 = scmp.lt.s32.totalorder %s13, 3
      %p144 = pnand %p142, %p143
      %p145 = pneg %p144
      // Predicated region
      $region25: #{tpu_custom_call.1} parent=5 // pred_check
        _
      $region26: #{tpu_custom_call.1} parent=5 // pred_check_branch
        %147 = sbr.rel (%p144) target = $region28
      $region27: #{tpu_custom_call.1} parent=5 // pred_region
        %s148 = ssub.s32 %s13, 1
        %p149 = scmp.lt.s32.totalorder %s18, 1
        %s150 = scalar_select %p149, %s18, 1
        %s151 = smul.addr %s150, 3
        %s152 = smul.addr %s151, 8
        %s153 = scalar_lea.vmem %s0, %s152
        %p154 = pneg %p39
        %p155 = pneg %p36
        %p156 = pneg %p60
        %p157 = pneg %p57
        %p158 = pneg %p86
        %p159 = pneg %p83
        %p160 = scmp.lt.s32.totalorder %s18, 1
        %s161 = scalar_select %p160, %s18, 1
        %s162 = smul.addr %s161, 2
        %s163 = smul.addr %s162, 8
        %s164 = scalar_lea.vmem %s2, %s163
        %p165 = pneg %p112
        %p166 = pneg %p109
        %s167 = sand.u32 %s99, 1
        %s168 = scalar_lea.sflag [#allocation3], %s167
        %s169 = sand.u32 %s99, 1
        %s170 = smul.addr %s169, 2
        %s171 = scalar_lea.vmem [#allocation2], %s170
        %p172 = scmp.lt.s32.totalorder %s18, 1
        %s173 = scalar_select %p172, %s18, 1
        %s174 = smul.addr %s173, 3
        %s175 = smul.addr %s174, 8
        %s176 = scalar_lea.vmem %s0, %s175
        %p177 = scmp.lt.s32.totalorder %s18, 1
        %s178 = scalar_select %p177, %s18, 1
        %s179 = smul.addr %s178, 2
        %s180 = smul.addr %s179, 8
        %s181 = scalar_lea.vmem %s2, %s180
        %v182 = vld [vmem:[%s176] sm:$0xff]
        %v183 = vld [vmem:[%s176 + $0x8] sm:$0xff]
        %v184 = vld [vmem:[%s176 + $0x1] sm:$0xff]
        %v185 = vld [vmem:[%s176 + $0x9] sm:$0xff]
        %v186 = vld [vmem:[%s176 + $0x2] sm:$0xff]
        %v187 = vld [vmem:[%s176 + $0xa] sm:$0xff]
        %v188 = vld [vmem:[%s1] sm:$0xff]
        %s189 = scalar_lea.vmem %s1, 8
        %v190 = vld [vmem:[%s189] sm:$0xff]
        %vm191 = vcmask 64512
        %v193 = vsel %vm191, %v184, 0
        %v196 = vsel %vm191, %v185, 0
        %198 = vmatprep.subr.mxu0 0.0
        %199 = vmatpush1.msra.mxu0 %v190
        %200 = vmatprep.subr.mxu0 0.0
        %201 = vmatpush1.msra.mxu0 0.0
        %202 = vmatprep.subr.mxu0 0.0
        %203 = vmatpush1.msra.mxu0 0.0
        %204 = vmatprep.subr.mxu0 0.0
        %205 = vmatpush1.msra.mxu0 0.0
        %206 = vmatprep.subr.mxu0 0.0
        %207 = vmatpush1.msra.mxu0 0.0
        %208 = vmatprep.subr.mxu0 0.0
        %209 = vmatpush1.msra.mxu0 0.0
        %210 = vmatprep.subr.mxu0 0.0
        %211 = vmatpush1.msra.mxu0 0.0
        %212 = vmatprep.subr.mxu0 0.0
        %213 = vmatpush1.msra.mxu0 0.0
        %214 = vmatprep.subr.mxu0 0.0
        %215 = vmatpush1.msra.mxu0 0.0
        %216 = vmatprep.subr.mxu0 0.0
        %217 = vmatpush1.msra.mxu0 0.0
        %218 = vmatprep.subr.mxu0 0.0
        %219 = vmatpush1.msra.mxu0 0.0
        %220 = vmatprep.subr.mxu0 0.0
        %221 = vmatpush1.msra.mxu0 0.0
        %222 = vmatprep.subr.mxu0 0.0
        %223 = vmatpush1.msra.mxu0 0.0
        %224 = vmatprep.subr.mxu0 0.0
        %225 = vmatpush1.msra.mxu0 0.0
        %226 = vmatprep.subr.mxu0 0.0
        %227 = vmatpush1.msra.mxu0 0.0
        %228 = vmatprep.subr.mxu0 0.0
        %229 = vmatpush1.msra.mxu0 0.0
        %230 = vmatprep.subr.mxu0 0.0
        %231 = vmatpush1.msra.mxu0 0.0
        %232 = vmatprep.subr.mxu0 0.0
        %233 = vmatpush1.msra.mxu0 0.0
        %234 = vmatprep.subr.mxu0 0.0
        %235 = vmatpush1.msra.mxu0 0.0
        %236 = vmatprep.subr.mxu0 0.0
        %237 = vmatpush1.msra.mxu0 0.0
        %238 = vmatprep.subr.mxu0 0.0
        %239 = vmatpush1.msra.mxu0 0.0
        %240 = vmatprep.subr.mxu0 0.0
        %241 = vmatpush1.msra.mxu0 0.0
        %242 = vmatprep.subr.mxu0 0.0
        %243 = vmatpush1.msra.mxu0 0.0
        %244 = vmatprep.subr.mxu0 0.0
        %245 = vmatpush1.msra.mxu0 0.0
        %246 = vmatprep.subr.mxu0 0.0
        %247 = vmatpush1.msra.mxu0 0.0
        %248 = vmatprep.subr.mxu0 0.0
        %249 = vmatpush1.msra.mxu0 0.0
        %250 = vmatprep.subr.mxu0 0.0
        %251 = vmatpush1.msra.mxu0 0.0
        %252 = vmatprep.subr.mxu0 0.0
        %253 = vmatpush1.msra.mxu0 0.0
        %254 = vmatprep.subr.mxu0 0.0
        %255 = vmatpush1.msra.mxu0 0.0
        %256 = vmatprep.subr.mxu0 0.0
        %257 = vmatpush1.msra.mxu0 0.0
        %258 = vmatprep.subr.mxu0 0.0
        %259 = vmatpush1.msra.mxu0 0.0
        %260 = vmatprep.subr.mxu0 0.0
        %261 = vmatpush1.msra.mxu0 0.0
        %262 = vmatprep.mubr.f32.mxu0 0.0
        %263 = vmatmul.mubr.f32.gmra.mrb[0].mxu0 %v193
        %v264 = vpop.f32.mrb[0].mxu0
        %v265 = vadd.f32 0.0, %v264
        %v266 = vpop.f32.mrb[0].mxu0
        %267 = vmatprep.mubr.f32.mxu0 0.0
        %268 = vmatmul.mubr.f32.gmra.mrb[0].mxu0 %v196
        %v269 = vpop.f32.mrb[0].mxu0
        %v270 = vadd.f32 0.0, %v269
        %v271 = vpop.f32.mrb[0].mxu0
        %272 = vdwg.mxu0
        %v274 = vsel %vm191, %v182, 0
        %v277 = vsel %vm191, %v183, 0
        %279 = vmatprep.subr.mxu0 0.0
        %280 = vmatpush1.msra.mxu0 %v188
        %281 = vmatprep.subr.mxu0 0.0
        %282 = vmatpush1.msra.mxu0 0.0
        %283 = vmatprep.subr.mxu0 0.0
        %284 = vmatpush1.msra.mxu0 0.0
        %285 = vmatprep.subr.mxu0 0.0
        %286 = vmatpush1.msra.mxu0 0.0
        %287 = vmatprep.subr.mxu0 0.0
        %288 = vmatpush1.msra.mxu0 0.0
        %289 = vmatprep.subr.mxu0 0.0
        %290 = vmatpush1.msra.mxu0 0.0
        %291 = vmatprep.subr.mxu0 0.0
        %292 = vmatpush1.msra.mxu0 0.0
        %293 = vmatprep.subr.mxu0 0.0
        %294 = vmatpush1.msra.mxu0 0.0
        %295 = vmatprep.subr.mxu0 0.0
        %296 = vmatpush1.msra.mxu0 0.0
        %297 = vmatprep.subr.mxu0 0.0
        %298 = vmatpush1.msra.mxu0 0.0
        %299 = vmatprep.subr.mxu0 0.0
        %300 = vmatpush1.msra.mxu0 0.0
        %301 = vmatprep.subr.mxu0 0.0
        %302 = vmatpush1.msra.mxu0 0.0
        %303 = vmatprep.subr.mxu0 0.0
        %304 = vmatpush1.msra.mxu0 0.0
        %305 = vmatprep.subr.mxu0 0.0
        %306 = vmatpush1.msra.mxu0 0.0
        %307 = vmatprep.subr.mxu0 0.0
        %308 = vmatpush1.msra.mxu0 0.0
        %309 = vmatprep.subr.mxu0 0.0
        %310 = vmatpush1.msra.mxu0 0.0
        %311 = vmatprep.subr.mxu0 0.0
        %312 = vmatpush1.msra.mxu0 0.0
        %313 = vmatprep.subr.mxu0 0.0
        %314 = vmatpush1.msra.mxu0 0.0
        %315 = vmatprep.subr.mxu0 0.0
        %316 = vmatpush1.msra.mxu0 0.0
        %317 = vmatprep.subr.mxu0 0.0
        %318 = vmatpush1.msra.mxu0 0.0
        %319 = vmatprep.subr.mxu0 0.0
        %320 = vmatpush1.msra.mxu0 0.0
        %321 = vmatprep.subr.mxu0 0.0
        %322 = vmatpush1.msra.mxu0 0.0
        %323 = vmatprep.subr.mxu0 0.0
        %324 = vmatpush1.msra.mxu0 0.0
        %325 = vmatprep.subr.mxu0 0.0
        %326 = vmatpush1.msra.mxu0 0.0
        %327 = vmatprep.subr.mxu0 0.0
        %328 = vmatpush1.msra.mxu0 0.0
        %329 = vmatprep.subr.mxu0 0.0
        %330 = vmatpush1.msra.mxu0 0.0
        %331 = vmatprep.subr.mxu0 0.0
        %332 = vmatpush1.msra.mxu0 0.0
        %333 = vmatprep.subr.mxu0 0.0
        %334 = vmatpush1.msra.mxu0 0.0
        %335 = vmatprep.subr.mxu0 0.0
        %336 = vmatpush1.msra.mxu0 0.0
        %337 = vmatprep.subr.mxu0 0.0
        %338 = vmatpush1.msra.mxu0 0.0
        %339 = vmatprep.subr.mxu0 0.0
        %340 = vmatpush1.msra.mxu0 0.0
        %341 = vmatprep.subr.mxu0 0.0
        %342 = vmatpush1.msra.mxu0 0.0
        %343 = vmatprep.mubr.f32.mxu0 0.0
        %344 = vmatmul.mubr.f32.gmra.mrb[0].mxu0 %v274
        %v345 = vpop.f32.mrb[0].mxu0
        %v346 = vadd.f32 %v265, %v345
        %v347 = vpop.f32.mrb[0].mxu0
        %348 = vmatprep.mubr.f32.mxu0 0.0
        %349 = vmatmul.mubr.f32.gmra.mrb[0].mxu0 %v277
        %v350 = vpop.f32.mrb[0].mxu0
        %v351 = vadd.f32 %v270, %v350
        %v352 = vpop.f32.mrb[0].mxu0
        %353 = vdwg.mxu0
        %s354 = scalar_lea.vmem %s1, 16
        %v355 = vld [vmem:[%s354] sm:$0xff]
        %v357 = vsel %vm191, %v186, 0
        %v360 = vsel %vm191, %v187, 0
        %362 = vmatprep.subr.mxu0 0.0
        %363 = vmatpush1.msra.mxu0 %v355
        %364 = vmatprep.subr.mxu0 0.0
        %365 = vmatpush1.msra.mxu0 0.0
        %366 = vmatprep.subr.mxu0 0.0
        %367 = vmatpush1.msra.mxu0 0.0
        %368 = vmatprep.subr.mxu0 0.0
        %369 = vmatpush1.msra.mxu0 0.0
        %370 = vmatprep.subr.mxu0 0.0
        %371 = vmatpush1.msra.mxu0 0.0
        %372 = vmatprep.subr.mxu0 0.0
        %373 = vmatpush1.msra.mxu0 0.0
        %374 = vmatprep.subr.mxu0 0.0
        %375 = vmatpush1.msra.mxu0 0.0
        %376 = vmatprep.subr.mxu0 0.0
        %377 = vmatpush1.msra.mxu0 0.0
        %378 = vmatprep.subr.mxu0 0.0
        %379 = vmatpush1.msra.mxu0 0.0
        %380 = vmatprep.subr.mxu0 0.0
        %381 = vmatpush1.msra.mxu0 0.0
        %382 = vmatprep.subr.mxu0 0.0
        %383 = vmatpush1.msra.mxu0 0.0
        %384 = vmatprep.subr.mxu0 0.0
        %385 = vmatpush1.msra.mxu0 0.0
        %386 = vmatprep.subr.mxu0 0.0
        %387 = vmatpush1.msra.mxu0 0.0
        %388 = vmatprep.subr.mxu0 0.0
        %389 = vmatpush1.msra.mxu0 0.0
        %390 = vmatprep.subr.mxu0 0.0
        %391 = vmatpush1.msra.mxu0 0.0
        %392 = vmatprep.subr.mxu0 0.0
        %393 = vmatpush1.msra.mxu0 0.0
        %394 = vmatprep.subr.mxu0 0.0
        %395 = vmatpush1.msra.mxu0 0.0
        %396 = vmatprep.subr.mxu0 0.0
        %397 = vmatpush1.msra.mxu0 0.0
        %398 = vmatprep.subr.mxu0 0.0
        %399 = vmatpush1.msra.mxu0 0.0
        %400 = vmatprep.subr.mxu0 0.0
        %401 = vmatpush1.msra.mxu0 0.0
        %402 = vmatprep.subr.mxu0 0.0
        %403 = vmatpush1.msra.mxu0 0.0
        %404 = vmatprep.subr.mxu0 0.0
        %405 = vmatpush1.msra.mxu0 0.0
        %406 = vmatprep.subr.mxu0 0.0
        %407 = vmatpush1.msra.mxu0 0.0
        %408 = vmatprep.subr.mxu0 0.0
        %409 = vmatpush1.msra.mxu0 0.0
        %410 = vmatprep.subr.mxu0 0.0
        %411 = vmatpush1.msra.mxu0 0.0
        %412 = vmatprep.subr.mxu0 0.0
        %413 = vmatpush1.msra.mxu0 0.0
        %414 = vmatprep.subr.mxu0 0.0
        %415 = vmatpush1.msra.mxu0 0.0
        %416 = vmatprep.subr.mxu0 0.0
        %417 = vmatpush1.msra.mxu0 0.0
        %418 = vmatprep.subr.mxu0 0.0
        %419 = vmatpush1.msra.mxu0 0.0
        %420 = vmatprep.subr.mxu0 0.0
        %421 = vmatpush1.msra.mxu0 0.0
        %422 = vmatprep.subr.mxu0 0.0
        %423 = vmatpush1.msra.mxu0 0.0
        %424 = vmatprep.subr.mxu0 0.0
        %425 = vmatpush1.msra.mxu0 0.0
        %426 = vmatprep.mubr.f32.mxu0 0.0
        %427 = vmatmul.mubr.f32.gmra.mrb[0].mxu0 %v357
        %v428 = vpop.f32.mrb[0].mxu0
        %v429 = vadd.f32 0.0, %v428
        %v430 = vpop.f32.mrb[0].mxu0
        %431 = vmatprep.mubr.f32.mxu0 0.0
        %432 = vmatmul.mubr.f32.gmra.mrb[0].mxu0 %v360
        %v433 = vpop.f32.mrb[0].mxu0
        %v434 = vadd.f32 0.0, %v433
        %v435 = vpop.f32.mrb[0].mxu0
        %436 = vdwg.mxu0
        %v437 = vadd.f32 %v346, %v429
        %v438 = vadd.f32 %v351, %v434
        %439 = vst.msk [vmem:[%s181] sm:$0xff] %vm191, %v437
        %440 = vst.msk [vmem:[%s181 + $0x8] sm:$0xff] %vm191, %v438
        %v441 = vsel %vm191, %v437, 0.0
        %v442 = vsel %vm191, %v438, 0.0
        %v443 = vadd.f32 %v441, %v442
        %v444 = vrot.slane %v443, 4
        %v445 = vadd.f32 %v443, %v444
        %v446 = vrot.slane %v445, 2
        %v447 = vadd.f32 %v445, %v446
        %v448 = vrot.slane %v447, 1
        %v449 = vadd.f32 %v447, %v448
        %v450 = vmul.f32 %v437, %v437
        %v451 = vmul.f32 %v438, %v438
        %v452 = vsel %vm191, %v450, 0.0
        %v453 = vsel %vm191, %v451, 0.0
        %v454 = vadd.f32 %v452, %v453
        %v455 = vrot.slane %v454, 4
        %v456 = vadd.f32 %v454, %v455
        %v457 = vrot.slane %v456, 2
        %v458 = vadd.f32 %v456, %v457
        %v459 = vrot.slane %v458, 1
        %v460 = vadd.f32 %v458, %v459
        %vm461 = vcmask 1040384
        %v462 = vsel %vm461, %v449, %v460
        %vm463 = vcmask 58368
        %464 = vst.msk [vmem:[%s171] sm:$0x3] %vm463, %v462
        %p465 = scmp.lt.s32.totalorder %s18, 1
        %s466 = scalar_select %p465, %s18, 1
        %s467 = smul.addr %s466, 2
        %s468 = smul.addr %s467, 8
        %s469 = scalar_lea.vmem %s2, %s468
        %s470 = sand.u32 %s99, 1
        %s471 = scalar_lea.sflag [#allocation3], %s470
        %s472 = sand.u32 %s99, 1
        %s473 = smul.addr %s472, 2
        %s474 = scalar_lea.vmem [#allocation2], %s473
        // Predicated region
        $region29: #{tpu_custom_call.1} parent=27 // pred_check
          %p475 = pneg %p83
        $region30: #{tpu_custom_call.1} parent=27 // pred_check_branch
          %477 = sbr.rel (%p475) target = $region32
        $region31: #{tpu_custom_call.1} parent=27 // pred_region
          _
        $region32: #{tpu_custom_call.1} parent=27 // pred_fallthru
          _
        // Predicated region
        $region33: #{tpu_custom_call.1} parent=27 // pred_check
          %p478 = pneg %p109
        $region34: #{tpu_custom_call.1} parent=27 // pred_check_branch
          %480 = sbr.rel (%p478) target = $region36
        $region35: #{tpu_custom_call.1} parent=27 // pred_region
          %s482 = ssub.s32 32, 32
          %483 = vsyncadd %s471, %s482
          %s484 = smul.addr %s18, 32
          %s485 = scalar_lea.hbm %s3, %s484
          %s487 = sshll.u32 %s474, 4
          %s488 = int_to_ptr.vmem [resolvable:$true] %s487
          %490 = dma.vmem_to_hbm [thread:$0]  %s488, 32, %s485, %s471
        $region36: #{tpu_custom_call.1} parent=27 // pred_fallthru
          _
      $region28: #{tpu_custom_call.1} parent=5 // pred_fallthru
        _
      %p491 = scmp.le.s32.totalorder 2, %s13
      // Predicated region
      $region37: #{tpu_custom_call.1} parent=5 // pred_check
        %p492 = pneg %p491
      $region38: #{tpu_custom_call.1} parent=5 // pred_check_branch
        %494 = sbr.rel (%p492) target = $region40
      $region39: #{tpu_custom_call.1} parent=5 // pred_region
        %s495 = ssub.s32 %s13, 2
        // Predicated region
        $region41: #{tpu_custom_call.1} parent=39 // pred_check
          %p496 = pneg %p89
        $region42: #{tpu_custom_call.1} parent=39 // pred_check_branch
          %498 = sbr.rel (%p496) target = $region44
        $region43: #{tpu_custom_call.1} parent=39 // pred_region
          %p499 = scmp.lt.s32.totalorder %s19, 1
          %s500 = scalar_select %p499, %s19, 1
          %s501 = smul.addr %s500, 2
          %s502 = smul.addr %s501, 8
          %s503 = scalar_lea.vmem %s2, %s502
        $region44: #{tpu_custom_call.1} parent=39 // pred_fallthru
          _
        // Predicated region
        $region45: #{tpu_custom_call.1} parent=39 // pred_check
          %p504 = pneg %p115
        $region46: #{tpu_custom_call.1} parent=39 // pred_check_branch
          %506 = sbr.rel (%p504) target = $region48
        $region47: #{tpu_custom_call.1} parent=39 // pred_region
          %s507 = sand.u32 %s100, 1
          %s508 = scalar_lea.sflag [#allocation3], %s507
          %s509 = sand.u32 %s100, 1
          %s510 = smul.addr %s509, 2
          %s511 = scalar_lea.vmem [#allocation2], %s510
          %512 = dma.done %s508, 32
        $region48: #{tpu_custom_call.1} parent=39 // pred_fallthru
          _
      $region40: #{tpu_custom_call.1} parent=5 // pred_fallthru
        _
    $region6: #{tpu_custom_call.1} parent=1 // loop_footer
      %s17 = sadd.s32 1, %s13
    $region7: #{tpu_custom_call.1} parent=1 // loop_footer_branch
      %12 = sbr.rel target = $region3
    $region8: #{tpu_custom_call.1} parent=1 // loop_exit
      _
    %513 = vsyncpa [#allocation3], 1
    %s514 = scalar_lea.sflag [#allocation3], 1
    %515 = vsyncpa %s514, 1

</llo_original>
